<compile_context>
chip_gen: v7x
topology: tpu7x:2x2x1
jax: 0.10.0
libtpu: 0.0.40
codegen_flags: <defaults>
</compile_context>

<pallas_src>
import jax
import jax.numpy as jnp
from jax import lax
from jax.experimental import pallas as pl
from jax.experimental.pallas import tpu as pltpu


def mlp_kernel(x_ref, w1_ref, w2_ref, o_ref):
    # x_ref : VMEM (in_f, S, 128)    batch on sublanes+lanes (full density)
    # w1_ref: SMEM (in_f + 1, hid)   last row = b1
    # w2_ref: SMEM (hid + 1, out_f)  last row = b2
    # o_ref : VMEM (out_f, S, 128)
    in_f = w1_ref.shape[0] - 1
    hid = w1_ref.shape[1]
    out_f = w2_ref.shape[1]
    S = x_ref.shape[1]

    # Hoist the tiny weight tables out of the chunk loop: one SMEM scalar
    # read each per grid step.
    w1 = [[w1_ref[i, h] for h in range(hid)] for i in range(in_f)]
    b1 = [w1_ref[in_f, h] for h in range(hid)]
    w2 = [[w2_ref[h, k] for k in range(out_f)] for h in range(hid)]
    b2 = [w2_ref[hid, k] for k in range(out_f)]

    # Walk the (possibly large) DMA tile in small sublane chunks so the live
    # set stays at ~(in_f + out_f + 1) chunk arrays regardless of tile size.
    cs = S
    for cand in (32, 16, 8):
        if S % cand == 0:
            cs = cand
            break
    n_chunks = S // cs

    def chunk(c, carry):
        r0 = pl.multiple_of(c * cs, cs)
        xs = [x_ref[i, pl.ds(r0, cs), :].astype(jnp.float32)
              for i in range(in_f)]
        # Output accumulators start at the folded-in layer-2 bias.
        acc = [jnp.full((cs, 128), b2[k], jnp.float32) for k in range(out_f)]
        # Each hidden row is computed and immediately consumed into the
        # output accumulators (small live range). Dropout = identity (eval).
        for h in range(hid):
            s = b1[h] + w1[0][h] * xs[0]
            for i in range(1, in_f):
                s = s + w1[i][h] * xs[i]
            r = jnp.maximum(s, 0.0)                      # ReLU
            for k in range(out_f):
                acc[k] = acc[k] + w2[h][k] * r
        for k in range(out_f):                           # lane-dense stores
            o_ref[k, pl.ds(r0, cs), :] = acc[k].astype(o_ref.dtype)
        return carry

    lax.fori_loop(0, n_chunks, chunk, 0)


def fold_bias(w, b):
    """Append the bias as an extra row of the (in, out) weight table."""
    return jnp.concatenate([w, b.reshape(1, -1)], axis=0).astype(jnp.float32)


def mlp_packed(x_fm, w1a, w2a, *, block_rows=1024):
    """Zero-relayout fast path.

    x_fm : (in_f, Bs, 128) float  -- batch = Bs*128 rows, feature-major packed
    w1a  : (in_f + 1, hid)  = [W1; b1]
    w2a  : (hid + 1, out_f) = [W2; b2]
    returns (out_f, Bs, 128) float32

    block_rows = sublanes per grid step (1024 -> 131072 rows, ~7 MiB double
    buffered; fits all generations' scoped-VMEM defaults.  Can be raised on
    v6e together with vmem_limit_bytes for slightly better streaming.)
    """
    in_f, bs, lanes = x_fm.shape
    assert lanes == 128
    assert w1a.shape[0] == in_f + 1
    hid = w1a.shape[1]
    out_f = w2a.shape[1]

    s_t = bs if bs <= block_rows else block_rows
    grid_b = pl.cdiv(bs, s_t)

    n_rows = bs * 128
    cost = pl.CostEstimate(
        flops=2 * n_rows * (in_f * hid + hid * out_f),
        transcendentals=0,
        bytes_accessed=(n_rows * (in_f + out_f) + w1a.size + w2a.size) * 4,
    )

    smem_spec = pl.BlockSpec(memory_space=pltpu.MemorySpace.SMEM)
    return pl.pallas_call(
        mlp_kernel,
        out_shape=jax.ShapeDtypeStruct((out_f, bs, 128), jnp.float32),
        grid=(grid_b,),
        in_specs=[
            pl.BlockSpec((in_f, s_t, 128), lambda i: (0, i, 0)),  # stream x
            smem_spec,                                            # W1|b1
            smem_spec,                                            # W2|b2
        ],
        out_specs=pl.BlockSpec((out_f, s_t, 128), lambda i: (0, i, 0)),
        compiler_params=pltpu.CompilerParams(
            dimension_semantics=("parallel",),   # megacore split on v7x
        ),
        cost_estimate=cost,
    )(x_fm, w1a, w2a)


def custom_model_forward(x, w1, b1, w2, b2, *, block_rows=1024):
    """Module-contract adapter: x (B, in_f) -> (B, out_f).

    NOTE: the transpose/pad below are XLA relayout copies kept only for
    row-major compatibility with the PyTorch contract; hot callers should
    produce the packed feature-major layout and call mlp_packed() directly.
    """
    B, in_f = x.shape
    out_f = w2.shape[1]
    w1a = fold_bias(w1, b1)
    w2a = fold_bias(w2, b2)

    bp = ((B + 127) // 128) * 128
    xp = x if bp == B else jnp.pad(x, ((0, bp - B), (0, 0)))
    x_fm = xp.T.reshape(in_f, bp // 128, 128)     # one fused relayout copy
    out_fm = mlp_packed(x_fm, w1a, w2a, block_rows=block_rows)
    return out_fm.reshape(out_f, bp).T[:B]        # one fused relayout copy


def init_params(key):
    """Deterministic init matching nn.Linear shapes (Kaiming-uniform style)."""
    k1, k2, k3, k4 = jax.random.split(key, 4)
    in1, hid, out = 4, 10, 3
    bound1 = 1.0 / jnp.sqrt(in1)
    bound2 = 1.0 / jnp.sqrt(hid)
    # stored as (in_features, out_features) == torch weight transposed
    w1 = jax.random.uniform(k1, (in1, hid), jnp.float32, -bound1, bound1)
    b1 = jax.random.uniform(k2, (hid,), jnp.float32, -bound1, bound1)
    w2 = jax.random.uniform(k3, (hid, out), jnp.float32, -bound2, bound2)
    b2 = jax.random.uniform(k4, (out,), jnp.float32, -bound2, bound2)
    return w1, b1, w2, b2


if __name__ == "__main__":
    key = jax.random.PRNGKey(0)
    pkey, xkey, xkey2 = jax.random.split(key, 3)
    w1, b1, w2, b2 = init_params(pkey)

    # 1) Small module-contract check: (B, 4) -> (B, 3) through the adapter.
    B = 8
    x = jax.random.normal(xkey, (B, 4), dtype=jnp.float32)
    out = jax.block_until_ready(custom_model_forward(x, w1, b1, w2, b2))
    ref = jnp.maximum(x @ w1 + b1, 0.0) @ w2 + b2
    assert out.shape == (B, 3)
    assert jnp.allclose(out, ref, atol=1e-5, rtol=1e-5)

    # 2) Packed feature-major fast path (zero wrapper relayout); a small
    #    block_rows forces several pipelined grid steps.
    bs = 24                                       # 24 * 128 = 3072 rows
    x_fm = jax.random.normal(xkey2, (4, bs, 128), dtype=jnp.float32)
    w1a, w2a = fold_bias(w1, b1), fold_bias(w2, b2)
    out_fm = jax.block_until_ready(mlp_packed(x_fm, w1a, w2a, block_rows=8))
    x_rm = x_fm.reshape(4, -1).T                  # reference-only relayout
    ref2 = jnp.maximum(x_rm @ w1 + b1, 0.0) @ w2 + b2
    got2 = out_fm.reshape(3, -1).T
    assert out_fm.shape == (3, bs, 128)
    assert jnp.allclose(got2, ref2, atol=1e-5, rtol=1e-5)

    print("KERNEL_OK")
</pallas_src>

<mosaic_0001>
module attributes {stable_mosaic.version = 11 : i64} {
  func.func @mlp_kernel(%arg0: i32, %arg1: memref<4x1x128xf32, #tpu.memory_space<vmem>>, %arg2: memref<5x10xf32, #tpu.memory_space<smem>>, %arg3: memref<11x3xf32, #tpu.memory_space<smem>>, %arg4: memref<3x1x128xf32, #tpu.memory_space<vmem>>) attributes {dimension_semantics = [#tpu.dimension_semantics<parallel>], iteration_bounds = array<i64: 1>, scalar_prefetch = 0 : i64, scratch_operands = 0 : i64, tpu.core_type = #tpu.core_type<tc>, window_params = [{transform_indices = @transform_0, window_bounds = array<i64: 4, 1, 128>}, {transform_indices = @transform_1, window_bounds = array<i64: 5, 10>}, {transform_indices = @transform_2, window_bounds = array<i64: 11, 3>}, {transform_indices = @transform_3, window_bounds = array<i64: 3, 1, 128>}]} {
    %c0 = arith.constant 0 : index
    %c0_0 = arith.constant 0 : index
    %0 = memref.load %arg2[%c0, %c0_0] : memref<5x10xf32, #tpu.memory_space<smem>>
    %c0_1 = arith.constant 0 : index
    %c1 = arith.constant 1 : index
    %1 = memref.load %arg2[%c0_1, %c1] : memref<5x10xf32, #tpu.memory_space<smem>>
    %c0_2 = arith.constant 0 : index
    %c2 = arith.constant 2 : index
    %2 = memref.load %arg2[%c0_2, %c2] : memref<5x10xf32, #tpu.memory_space<smem>>
    %c0_3 = arith.constant 0 : index
    %c3 = arith.constant 3 : index
    %3 = memref.load %arg2[%c0_3, %c3] : memref<5x10xf32, #tpu.memory_space<smem>>
    %c0_4 = arith.constant 0 : index
    %c4 = arith.constant 4 : index
    %4 = memref.load %arg2[%c0_4, %c4] : memref<5x10xf32, #tpu.memory_space<smem>>
    %c0_5 = arith.constant 0 : index
    %c5 = arith.constant 5 : index
    %5 = memref.load %arg2[%c0_5, %c5] : memref<5x10xf32, #tpu.memory_space<smem>>
    %c0_6 = arith.constant 0 : index
    %c6 = arith.constant 6 : index
    %6 = memref.load %arg2[%c0_6, %c6] : memref<5x10xf32, #tpu.memory_space<smem>>
    %c0_7 = arith.constant 0 : index
    %c7 = arith.constant 7 : index
    %7 = memref.load %arg2[%c0_7, %c7] : memref<5x10xf32, #tpu.memory_space<smem>>
    %c0_8 = arith.constant 0 : index
    %c8 = arith.constant 8 : index
    %8 = memref.load %arg2[%c0_8, %c8] : memref<5x10xf32, #tpu.memory_space<smem>>
    %c0_9 = arith.constant 0 : index
    %c9 = arith.constant 9 : index
    %9 = memref.load %arg2[%c0_9, %c9] : memref<5x10xf32, #tpu.memory_space<smem>>
    %c1_10 = arith.constant 1 : index
    %c0_11 = arith.constant 0 : index
    %10 = memref.load %arg2[%c1_10, %c0_11] : memref<5x10xf32, #tpu.memory_space<smem>>
    %c1_12 = arith.constant 1 : index
    %c1_13 = arith.constant 1 : index
    %11 = memref.load %arg2[%c1_12, %c1_13] : memref<5x10xf32, #tpu.memory_space<smem>>
    %c1_14 = arith.constant 1 : index
    %c2_15 = arith.constant 2 : index
    %12 = memref.load %arg2[%c1_14, %c2_15] : memref<5x10xf32, #tpu.memory_space<smem>>
    %c1_16 = arith.constant 1 : index
    %c3_17 = arith.constant 3 : index
    %13 = memref.load %arg2[%c1_16, %c3_17] : memref<5x10xf32, #tpu.memory_space<smem>>
    %c1_18 = arith.constant 1 : index
    %c4_19 = arith.constant 4 : index
    %14 = memref.load %arg2[%c1_18, %c4_19] : memref<5x10xf32, #tpu.memory_space<smem>>
    %c1_20 = arith.constant 1 : index
    %c5_21 = arith.constant 5 : index
    %15 = memref.load %arg2[%c1_20, %c5_21] : memref<5x10xf32, #tpu.memory_space<smem>>
    %c1_22 = arith.constant 1 : index
    %c6_23 = arith.constant 6 : index
    %16 = memref.load %arg2[%c1_22, %c6_23] : memref<5x10xf32, #tpu.memory_space<smem>>
    %c1_24 = arith.constant 1 : index
    %c7_25 = arith.constant 7 : index
    %17 = memref.load %arg2[%c1_24, %c7_25] : memref<5x10xf32, #tpu.memory_space<smem>>
    %c1_26 = arith.constant 1 : index
    %c8_27 = arith.constant 8 : index
    %18 = memref.load %arg2[%c1_26, %c8_27] : memref<5x10xf32, #tpu.memory_space<smem>>
    %c1_28 = arith.constant 1 : index
    %c9_29 = arith.constant 9 : index
    %19 = memref.load %arg2[%c1_28, %c9_29] : memref<5x10xf32, #tpu.memory_space<smem>>
    %c2_30 = arith.constant 2 : index
    %c0_31 = arith.constant 0 : index
    %20 = memref.load %arg2[%c2_30, %c0_31] : memref<5x10xf32, #tpu.memory_space<smem>>
    %c2_32 = arith.constant 2 : index
    %c1_33 = arith.constant 1 : index
    %21 = memref.load %arg2[%c2_32, %c1_33] : memref<5x10xf32, #tpu.memory_space<smem>>
    %c2_34 = arith.constant 2 : index
    %c2_35 = arith.constant 2 : index
    %22 = memref.load %arg2[%c2_34, %c2_35] : memref<5x10xf32, #tpu.memory_space<smem>>
    %c2_36 = arith.constant 2 : index
    %c3_37 = arith.constant 3 : index
    %23 = memref.load %arg2[%c2_36, %c3_37] : memref<5x10xf32, #tpu.memory_space<smem>>
    %c2_38 = arith.constant 2 : index
    %c4_39 = arith.constant 4 : index
    %24 = memref.load %arg2[%c2_38, %c4_39] : memref<5x10xf32, #tpu.memory_space<smem>>
    %c2_40 = arith.constant 2 : index
    %c5_41 = arith.constant 5 : index
    %25 = memref.load %arg2[%c2_40, %c5_41] : memref<5x10xf32, #tpu.memory_space<smem>>
    %c2_42 = arith.constant 2 : index
    %c6_43 = arith.constant 6 : index
    %26 = memref.load %arg2[%c2_42, %c6_43] : memref<5x10xf32, #tpu.memory_space<smem>>
    %c2_44 = arith.constant 2 : index
    %c7_45 = arith.constant 7 : index
    %27 = memref.load %arg2[%c2_44, %c7_45] : memref<5x10xf32, #tpu.memory_space<smem>>
    %c2_46 = arith.constant 2 : index
    %c8_47 = arith.constant 8 : index
    %28 = memref.load %arg2[%c2_46, %c8_47] : memref<5x10xf32, #tpu.memory_space<smem>>
    %c2_48 = arith.constant 2 : index
    %c9_49 = arith.constant 9 : index
    %29 = memref.load %arg2[%c2_48, %c9_49] : memref<5x10xf32, #tpu.memory_space<smem>>
    %c3_50 = arith.constant 3 : index
    %c0_51 = arith.constant 0 : index
    %30 = memref.load %arg2[%c3_50, %c0_51] : memref<5x10xf32, #tpu.memory_space<smem>>
    %c3_52 = arith.constant 3 : index
    %c1_53 = arith.constant 1 : index
    %31 = memref.load %arg2[%c3_52, %c1_53] : memref<5x10xf32, #tpu.memory_space<smem>>
    %c3_54 = arith.constant 3 : index
    %c2_55 = arith.constant 2 : index
    %32 = memref.load %arg2[%c3_54, %c2_55] : memref<5x10xf32, #tpu.memory_space<smem>>
    %c3_56 = arith.constant 3 : index
    %c3_57 = arith.constant 3 : index
    %33 = memref.load %arg2[%c3_56, %c3_57] : memref<5x10xf32, #tpu.memory_space<smem>>
    %c3_58 = arith.constant 3 : index
    %c4_59 = arith.constant 4 : index
    %34 = memref.load %arg2[%c3_58, %c4_59] : memref<5x10xf32, #tpu.memory_space<smem>>
    %c3_60 = arith.constant 3 : index
    %c5_61 = arith.constant 5 : index
    %35 = memref.load %arg2[%c3_60, %c5_61] : memref<5x10xf32, #tpu.memory_space<smem>>
    %c3_62 = arith.constant 3 : index
    %c6_63 = arith.constant 6 : index
    %36 = memref.load %arg2[%c3_62, %c6_63] : memref<5x10xf32, #tpu.memory_space<smem>>
    %c3_64 = arith.constant 3 : index
    %c7_65 = arith.constant 7 : index
    %37 = memref.load %arg2[%c3_64, %c7_65] : memref<5x10xf32, #tpu.memory_space<smem>>
    %c3_66 = arith.constant 3 : index
    %c8_67 = arith.constant 8 : index
    %38 = memref.load %arg2[%c3_66, %c8_67] : memref<5x10xf32, #tpu.memory_space<smem>>
    %c3_68 = arith.constant 3 : index
    %c9_69 = arith.constant 9 : index
    %39 = memref.load %arg2[%c3_68, %c9_69] : memref<5x10xf32, #tpu.memory_space<smem>>
    %c4_70 = arith.constant 4 : index
    %c0_71 = arith.constant 0 : index
    %40 = memref.load %arg2[%c4_70, %c0_71] : memref<5x10xf32, #tpu.memory_space<smem>>
    %c4_72 = arith.constant 4 : index
    %c1_73 = arith.constant 1 : index
    %41 = memref.load %arg2[%c4_72, %c1_73] : memref<5x10xf32, #tpu.memory_space<smem>>
    %c4_74 = arith.constant 4 : index
    %c2_75 = arith.constant 2 : index
    %42 = memref.load %arg2[%c4_74, %c2_75] : memref<5x10xf32, #tpu.memory_space<smem>>
    %c4_76 = arith.constant 4 : index
    %c3_77 = arith.constant 3 : index
    %43 = memref.load %arg2[%c4_76, %c3_77] : memref<5x10xf32, #tpu.memory_space<smem>>
    %c4_78 = arith.constant 4 : index
    %c4_79 = arith.constant 4 : index
    %44 = memref.load %arg2[%c4_78, %c4_79] : memref<5x10xf32, #tpu.memory_space<smem>>
    %c4_80 = arith.constant 4 : index
    %c5_81 = arith.constant 5 : index
    %45 = memref.load %arg2[%c4_80, %c5_81] : memref<5x10xf32, #tpu.memory_space<smem>>
    %c4_82 = arith.constant 4 : index
    %c6_83 = arith.constant 6 : index
    %46 = memref.load %arg2[%c4_82, %c6_83] : memref<5x10xf32, #tpu.memory_space<smem>>
    %c4_84 = arith.constant 4 : index
    %c7_85 = arith.constant 7 : index
    %47 = memref.load %arg2[%c4_84, %c7_85] : memref<5x10xf32, #tpu.memory_space<smem>>
    %c4_86 = arith.constant 4 : index
    %c8_87 = arith.constant 8 : index
    %48 = memref.load %arg2[%c4_86, %c8_87] : memref<5x10xf32, #tpu.memory_space<smem>>
    %c4_88 = arith.constant 4 : index
    %c9_89 = arith.constant 9 : index
    %49 = memref.load %arg2[%c4_88, %c9_89] : memref<5x10xf32, #tpu.memory_space<smem>>
    %c0_90 = arith.constant 0 : index
    %c0_91 = arith.constant 0 : index
    %50 = memref.load %arg3[%c0_90, %c0_91] : memref<11x3xf32, #tpu.memory_space<smem>>
    %c0_92 = arith.constant 0 : index
    %c1_93 = arith.constant 1 : index
    %51 = memref.load %arg3[%c0_92, %c1_93] : memref<11x3xf32, #tpu.memory_space<smem>>
    %c0_94 = arith.constant 0 : index
    %c2_95 = arith.constant 2 : index
    %52 = memref.load %arg3[%c0_94, %c2_95] : memref<11x3xf32, #tpu.memory_space<smem>>
    %c1_96 = arith.constant 1 : index
    %c0_97 = arith.constant 0 : index
    %53 = memref.load %arg3[%c1_96, %c0_97] : memref<11x3xf32, #tpu.memory_space<smem>>
    %c1_98 = arith.constant 1 : index
    %c1_99 = arith.constant 1 : index
    %54 = memref.load %arg3[%c1_98, %c1_99] : memref<11x3xf32, #tpu.memory_space<smem>>
    %c1_100 = arith.constant 1 : index
    %c2_101 = arith.constant 2 : index
    %55 = memref.load %arg3[%c1_100, %c2_101] : memref<11x3xf32, #tpu.memory_space<smem>>
    %c2_102 = arith.constant 2 : index
    %c0_103 = arith.constant 0 : index
    %56 = memref.load %arg3[%c2_102, %c0_103] : memref<11x3xf32, #tpu.memory_space<smem>>
    %c2_104 = arith.constant 2 : index
    %c1_105 = arith.constant 1 : index
    %57 = memref.load %arg3[%c2_104, %c1_105] : memref<11x3xf32, #tpu.memory_space<smem>>
    %c2_106 = arith.constant 2 : index
    %c2_107 = arith.constant 2 : index
    %58 = memref.load %arg3[%c2_106, %c2_107] : memref<11x3xf32, #tpu.memory_space<smem>>
    %c3_108 = arith.constant 3 : index
    %c0_109 = arith.constant 0 : index
    %59 = memref.load %arg3[%c3_108, %c0_109] : memref<11x3xf32, #tpu.memory_space<smem>>
    %c3_110 = arith.constant 3 : index
    %c1_111 = arith.constant 1 : index
    %60 = memref.load %arg3[%c3_110, %c1_111] : memref<11x3xf32, #tpu.memory_space<smem>>
    %c3_112 = arith.constant 3 : index
    %c2_113 = arith.constant 2 : index
    %61 = memref.load %arg3[%c3_112, %c2_113] : memref<11x3xf32, #tpu.memory_space<smem>>
    %c4_114 = arith.constant 4 : index
    %c0_115 = arith.constant 0 : index
    %62 = memref.load %arg3[%c4_114, %c0_115] : memref<11x3xf32, #tpu.memory_space<smem>>
    %c4_116 = arith.constant 4 : index
    %c1_117 = arith.constant 1 : index
    %63 = memref.load %arg3[%c4_116, %c1_117] : memref<11x3xf32, #tpu.memory_space<smem>>
    %c4_118 = arith.constant 4 : index
    %c2_119 = arith.constant 2 : index
    %64 = memref.load %arg3[%c4_118, %c2_119] : memref<11x3xf32, #tpu.memory_space<smem>>
    %c5_120 = arith.constant 5 : index
    %c0_121 = arith.constant 0 : index
    %65 = memref.load %arg3[%c5_120, %c0_121] : memref<11x3xf32, #tpu.memory_space<smem>>
    %c5_122 = arith.constant 5 : index
    %c1_123 = arith.constant 1 : index
    %66 = memref.load %arg3[%c5_122, %c1_123] : memref<11x3xf32, #tpu.memory_space<smem>>
    %c5_124 = arith.constant 5 : index
    %c2_125 = arith.constant 2 : index
    %67 = memref.load %arg3[%c5_124, %c2_125] : memref<11x3xf32, #tpu.memory_space<smem>>
    %c6_126 = arith.constant 6 : index
    %c0_127 = arith.constant 0 : index
    %68 = memref.load %arg3[%c6_126, %c0_127] : memref<11x3xf32, #tpu.memory_space<smem>>
    %c6_128 = arith.constant 6 : index
    %c1_129 = arith.constant 1 : index
    %69 = memref.load %arg3[%c6_128, %c1_129] : memref<11x3xf32, #tpu.memory_space<smem>>
    %c6_130 = arith.constant 6 : index
    %c2_131 = arith.constant 2 : index
    %70 = memref.load %arg3[%c6_130, %c2_131] : memref<11x3xf32, #tpu.memory_space<smem>>
    %c7_132 = arith.constant 7 : index
    %c0_133 = arith.constant 0 : index
    %71 = memref.load %arg3[%c7_132, %c0_133] : memref<11x3xf32, #tpu.memory_space<smem>>
    %c7_134 = arith.constant 7 : index
    %c1_135 = arith.constant 1 : index
    %72 = memref.load %arg3[%c7_134, %c1_135] : memref<11x3xf32, #tpu.memory_space<smem>>
    %c7_136 = arith.constant 7 : index
    %c2_137 = arith.constant 2 : index
    %73 = memref.load %arg3[%c7_136, %c2_137] : memref<11x3xf32, #tpu.memory_space<smem>>
    %c8_138 = arith.constant 8 : index
    %c0_139 = arith.constant 0 : index
    %74 = memref.load %arg3[%c8_138, %c0_139] : memref<11x3xf32, #tpu.memory_space<smem>>
    %c8_140 = arith.constant 8 : index
    %c1_141 = arith.constant 1 : index
    %75 = memref.load %arg3[%c8_140, %c1_141] : memref<11x3xf32, #tpu.memory_space<smem>>
    %c8_142 = arith.constant 8 : index
    %c2_143 = arith.constant 2 : index
    %76 = memref.load %arg3[%c8_142, %c2_143] : memref<11x3xf32, #tpu.memory_space<smem>>
    %c9_144 = arith.constant 9 : index
    %c0_145 = arith.constant 0 : index
    %77 = memref.load %arg3[%c9_144, %c0_145] : memref<11x3xf32, #tpu.memory_space<smem>>
    %c9_146 = arith.constant 9 : index
    %c1_147 = arith.constant 1 : index
    %78 = memref.load %arg3[%c9_146, %c1_147] : memref<11x3xf32, #tpu.memory_space<smem>>
    %c9_148 = arith.constant 9 : index
    %c2_149 = arith.constant 2 : index
    %79 = memref.load %arg3[%c9_148, %c2_149] : memref<11x3xf32, #tpu.memory_space<smem>>
    %c10 = arith.constant 10 : index
    %c0_150 = arith.constant 0 : index
    %80 = memref.load %arg3[%c10, %c0_150] : memref<11x3xf32, #tpu.memory_space<smem>>
    %c10_151 = arith.constant 10 : index
    %c1_152 = arith.constant 1 : index
    %81 = memref.load %arg3[%c10_151, %c1_152] : memref<11x3xf32, #tpu.memory_space<smem>>
    %c10_153 = arith.constant 10 : index
    %c2_154 = arith.constant 2 : index
    %82 = memref.load %arg3[%c10_153, %c2_154] : memref<11x3xf32, #tpu.memory_space<smem>>
    %c0_i32 = arith.constant 0 : i32
    %c1_i32 = arith.constant 1 : i32
    %83 = arith.muli %c0_i32, %c1_i32 : i32
    %84 = tpu.assume_multiple %83, 1 : i32
    %c0_155 = arith.constant 0 : index
    %85 = arith.index_cast %84 : i32 to index
    %c0_156 = arith.constant 0 : index
    %86 = vector.load %arg1[%c0_155, %85, %c0_156] : memref<4x1x128xf32, #tpu.memory_space<vmem>>, vector<1x1x128xf32>
    %87 = vector.shape_cast %86 : vector<1x1x128xf32> to vector<1x128xf32>
    %c1_157 = arith.constant 1 : index
    %88 = arith.index_cast %84 : i32 to index
    %c0_158 = arith.constant 0 : index
    %89 = vector.load %arg1[%c1_157, %88, %c0_158] : memref<4x1x128xf32, #tpu.memory_space<vmem>>, vector<1x1x128xf32>
    %90 = vector.shape_cast %89 : vector<1x1x128xf32> to vector<1x128xf32>
    %c2_159 = arith.constant 2 : index
    %91 = arith.index_cast %84 : i32 to index
    %c0_160 = arith.constant 0 : index
    %92 = vector.load %arg1[%c2_159, %91, %c0_160] : memref<4x1x128xf32, #tpu.memory_space<vmem>>, vector<1x1x128xf32>
    %93 = vector.shape_cast %92 : vector<1x1x128xf32> to vector<1x128xf32>
    %c3_161 = arith.constant 3 : index
    %94 = arith.index_cast %84 : i32 to index
    %c0_162 = arith.constant 0 : index
    %95 = vector.load %arg1[%c3_161, %94, %c0_162] : memref<4x1x128xf32, #tpu.memory_space<vmem>>, vector<1x1x128xf32>
    %96 = vector.shape_cast %95 : vector<1x1x128xf32> to vector<1x128xf32>
    %97 = vector.broadcast %80 : f32 to vector<1x128xf32>
    %98 = vector.broadcast %81 : f32 to vector<1x128xf32>
    %99 = vector.broadcast %82 : f32 to vector<1x128xf32>
    %100 = vector.broadcast %0 : f32 to vector<1x128xf32>
    %101 = arith.mulf %100, %87 : vector<1x128xf32>
    %102 = vector.broadcast %40 : f32 to vector<1x128xf32>
    %103 = arith.addf %102, %101 : vector<1x128xf32>
    %104 = vector.broadcast %10 : f32 to vector<1x128xf32>
    %105 = arith.mulf %104, %90 : vector<1x128xf32>
    %106 = arith.addf %103, %105 : vector<1x128xf32>
    %107 = vector.broadcast %20 : f32 to vector<1x128xf32>
    %108 = arith.mulf %107, %93 : vector<1x128xf32>
    %109 = arith.addf %106, %108 : vector<1x128xf32>
    %110 = vector.broadcast %30 : f32 to vector<1x128xf32>
    %111 = arith.mulf %110, %96 : vector<1x128xf32>
    %112 = arith.addf %109, %111 : vector<1x128xf32>
    %cst = arith.constant 0.000000e+00 : f32
    %113 = vector.broadcast %cst : f32 to vector<1x128xf32>
    %114 = arith.maximumf %112, %113 : vector<1x128xf32>
    %115 = vector.broadcast %50 : f32 to vector<1x128xf32>
    %116 = arith.mulf %115, %114 : vector<1x128xf32>
    %117 = arith.addf %97, %116 : vector<1x128xf32>
    %118 = vector.broadcast %51 : f32 to vector<1x128xf32>
    %119 = arith.mulf %118, %114 : vector<1x128xf32>
    %120 = arith.addf %98, %119 : vector<1x128xf32>
    %121 = vector.broadcast %52 : f32 to vector<1x128xf32>
    %122 = arith.mulf %121, %114 : vector<1x128xf32>
    %123 = arith.addf %99, %122 : vector<1x128xf32>
    %124 = vector.broadcast %1 : f32 to vector<1x128xf32>
    %125 = arith.mulf %124, %87 : vector<1x128xf32>
    %126 = vector.broadcast %41 : f32 to vector<1x128xf32>
    %127 = arith.addf %126, %125 : vector<1x128xf32>
    %128 = vector.broadcast %11 : f32 to vector<1x128xf32>
    %129 = arith.mulf %128, %90 : vector<1x128xf32>
    %130 = arith.addf %127, %129 : vector<1x128xf32>
    %131 = vector.broadcast %21 : f32 to vector<1x128xf32>
    %132 = arith.mulf %131, %93 : vector<1x128xf32>
    %133 = arith.addf %130, %132 : vector<1x128xf32>
    %134 = vector.broadcast %31 : f32 to vector<1x128xf32>
    %135 = arith.mulf %134, %96 : vector<1x128xf32>
    %136 = arith.addf %133, %135 : vector<1x128xf32>
    %cst_163 = arith.constant 0.000000e+00 : f32
    %137 = vector.broadcast %cst_163 : f32 to vector<1x128xf32>
    %138 = arith.maximumf %136, %137 : vector<1x128xf32>
    %139 = vector.broadcast %53 : f32 to vector<1x128xf32>
    %140 = arith.mulf %139, %138 : vector<1x128xf32>
    %141 = arith.addf %117, %140 : vector<1x128xf32>
    %142 = vector.broadcast %54 : f32 to vector<1x128xf32>
    %143 = arith.mulf %142, %138 : vector<1x128xf32>
    %144 = arith.addf %120, %143 : vector<1x128xf32>
    %145 = vector.broadcast %55 : f32 to vector<1x128xf32>
    %146 = arith.mulf %145, %138 : vector<1x128xf32>
    %147 = arith.addf %123, %146 : vector<1x128xf32>
    %148 = vector.broadcast %2 : f32 to vector<1x128xf32>
    %149 = arith.mulf %148, %87 : vector<1x128xf32>
    %150 = vector.broadcast %42 : f32 to vector<1x128xf32>
    %151 = arith.addf %150, %149 : vector<1x128xf32>
    %152 = vector.broadcast %12 : f32 to vector<1x128xf32>
    %153 = arith.mulf %152, %90 : vector<1x128xf32>
    %154 = arith.addf %151, %153 : vector<1x128xf32>
    %155 = vector.broadcast %22 : f32 to vector<1x128xf32>
    %156 = arith.mulf %155, %93 : vector<1x128xf32>
    %157 = arith.addf %154, %156 : vector<1x128xf32>
    %158 = vector.broadcast %32 : f32 to vector<1x128xf32>
    %159 = arith.mulf %158, %96 : vector<1x128xf32>
    %160 = arith.addf %157, %159 : vector<1x128xf32>
    %cst_164 = arith.constant 0.000000e+00 : f32
    %161 = vector.broadcast %cst_164 : f32 to vector<1x128xf32>
    %162 = arith.maximumf %160, %161 : vector<1x128xf32>
    %163 = vector.broadcast %56 : f32 to vector<1x128xf32>
    %164 = arith.mulf %163, %162 : vector<1x128xf32>
    %165 = arith.addf %141, %164 : vector<1x128xf32>
    %166 = vector.broadcast %57 : f32 to vector<1x128xf32>
    %167 = arith.mulf %166, %162 : vector<1x128xf32>
    %168 = arith.addf %144, %167 : vector<1x128xf32>
    %169 = vector.broadcast %58 : f32 to vector<1x128xf32>
    %170 = arith.mulf %169, %162 : vector<1x128xf32>
    %171 = arith.addf %147, %170 : vector<1x128xf32>
    %172 = vector.broadcast %3 : f32 to vector<1x128xf32>
    %173 = arith.mulf %172, %87 : vector<1x128xf32>
    %174 = vector.broadcast %43 : f32 to vector<1x128xf32>
    %175 = arith.addf %174, %173 : vector<1x128xf32>
    %176 = vector.broadcast %13 : f32 to vector<1x128xf32>
    %177 = arith.mulf %176, %90 : vector<1x128xf32>
    %178 = arith.addf %175, %177 : vector<1x128xf32>
    %179 = vector.broadcast %23 : f32 to vector<1x128xf32>
    %180 = arith.mulf %179, %93 : vector<1x128xf32>
    %181 = arith.addf %178, %180 : vector<1x128xf32>
    %182 = vector.broadcast %33 : f32 to vector<1x128xf32>
    %183 = arith.mulf %182, %96 : vector<1x128xf32>
    %184 = arith.addf %181, %183 : vector<1x128xf32>
    %cst_165 = arith.constant 0.000000e+00 : f32
    %185 = vector.broadcast %cst_165 : f32 to vector<1x128xf32>
    %186 = arith.maximumf %184, %185 : vector<1x128xf32>
    %187 = vector.broadcast %59 : f32 to vector<1x128xf32>
    %188 = arith.mulf %187, %186 : vector<1x128xf32>
    %189 = arith.addf %165, %188 : vector<1x128xf32>
    %190 = vector.broadcast %60 : f32 to vector<1x128xf32>
    %191 = arith.mulf %190, %186 : vector<1x128xf32>
    %192 = arith.addf %168, %191 : vector<1x128xf32>
    %193 = vector.broadcast %61 : f32 to vector<1x128xf32>
    %194 = arith.mulf %193, %186 : vector<1x128xf32>
    %195 = arith.addf %171, %194 : vector<1x128xf32>
    %196 = vector.broadcast %4 : f32 to vector<1x128xf32>
    %197 = arith.mulf %196, %87 : vector<1x128xf32>
    %198 = vector.broadcast %44 : f32 to vector<1x128xf32>
    %199 = arith.addf %198, %197 : vector<1x128xf32>
    %200 = vector.broadcast %14 : f32 to vector<1x128xf32>
    %201 = arith.mulf %200, %90 : vector<1x128xf32>
    %202 = arith.addf %199, %201 : vector<1x128xf32>
    %203 = vector.broadcast %24 : f32 to vector<1x128xf32>
    %204 = arith.mulf %203, %93 : vector<1x128xf32>
    %205 = arith.addf %202, %204 : vector<1x128xf32>
    %206 = vector.broadcast %34 : f32 to vector<1x128xf32>
    %207 = arith.mulf %206, %96 : vector<1x128xf32>
    %208 = arith.addf %205, %207 : vector<1x128xf32>
    %cst_166 = arith.constant 0.000000e+00 : f32
    %209 = vector.broadcast %cst_166 : f32 to vector<1x128xf32>
    %210 = arith.maximumf %208, %209 : vector<1x128xf32>
    %211 = vector.broadcast %62 : f32 to vector<1x128xf32>
    %212 = arith.mulf %211, %210 : vector<1x128xf32>
    %213 = arith.addf %189, %212 : vector<1x128xf32>
    %214 = vector.broadcast %63 : f32 to vector<1x128xf32>
    %215 = arith.mulf %214, %210 : vector<1x128xf32>
    %216 = arith.addf %192, %215 : vector<1x128xf32>
    %217 = vector.broadcast %64 : f32 to vector<1x128xf32>
    %218 = arith.mulf %217, %210 : vector<1x128xf32>
    %219 = arith.addf %195, %218 : vector<1x128xf32>
    %220 = vector.broadcast %5 : f32 to vector<1x128xf32>
    %221 = arith.mulf %220, %87 : vector<1x128xf32>
    %222 = vector.broadcast %45 : f32 to vector<1x128xf32>
    %223 = arith.addf %222, %221 : vector<1x128xf32>
    %224 = vector.broadcast %15 : f32 to vector<1x128xf32>
    %225 = arith.mulf %224, %90 : vector<1x128xf32>
    %226 = arith.addf %223, %225 : vector<1x128xf32>
    %227 = vector.broadcast %25 : f32 to vector<1x128xf32>
    %228 = arith.mulf %227, %93 : vector<1x128xf32>
    %229 = arith.addf %226, %228 : vector<1x128xf32>
    %230 = vector.broadcast %35 : f32 to vector<1x128xf32>
    %231 = arith.mulf %230, %96 : vector<1x128xf32>
    %232 = arith.addf %229, %231 : vector<1x128xf32>
    %cst_167 = arith.constant 0.000000e+00 : f32
    %233 = vector.broadcast %cst_167 : f32 to vector<1x128xf32>
    %234 = arith.maximumf %232, %233 : vector<1x128xf32>
    %235 = vector.broadcast %65 : f32 to vector<1x128xf32>
    %236 = arith.mulf %235, %234 : vector<1x128xf32>
    %237 = arith.addf %213, %236 : vector<1x128xf32>
    %238 = vector.broadcast %66 : f32 to vector<1x128xf32>
    %239 = arith.mulf %238, %234 : vector<1x128xf32>
    %240 = arith.addf %216, %239 : vector<1x128xf32>
    %241 = vector.broadcast %67 : f32 to vector<1x128xf32>
    %242 = arith.mulf %241, %234 : vector<1x128xf32>
    %243 = arith.addf %219, %242 : vector<1x128xf32>
    %244 = vector.broadcast %6 : f32 to vector<1x128xf32>
    %245 = arith.mulf %244, %87 : vector<1x128xf32>
    %246 = vector.broadcast %46 : f32 to vector<1x128xf32>
    %247 = arith.addf %246, %245 : vector<1x128xf32>
    %248 = vector.broadcast %16 : f32 to vector<1x128xf32>
    %249 = arith.mulf %248, %90 : vector<1x128xf32>
    %250 = arith.addf %247, %249 : vector<1x128xf32>
    %251 = vector.broadcast %26 : f32 to vector<1x128xf32>
    %252 = arith.mulf %251, %93 : vector<1x128xf32>
    %253 = arith.addf %250, %252 : vector<1x128xf32>
    %254 = vector.broadcast %36 : f32 to vector<1x128xf32>
    %255 = arith.mulf %254, %96 : vector<1x128xf32>
    %256 = arith.addf %253, %255 : vector<1x128xf32>
    %cst_168 = arith.constant 0.000000e+00 : f32
    %257 = vector.broadcast %cst_168 : f32 to vector<1x128xf32>
    %258 = arith.maximumf %256, %257 : vector<1x128xf32>
    %259 = vector.broadcast %68 : f32 to vector<1x128xf32>
    %260 = arith.mulf %259, %258 : vector<1x128xf32>
    %261 = arith.addf %237, %260 : vector<1x128xf32>
    %262 = vector.broadcast %69 : f32 to vector<1x128xf32>
    %263 = arith.mulf %262, %258 : vector<1x128xf32>
    %264 = arith.addf %240, %263 : vector<1x128xf32>
    %265 = vector.broadcast %70 : f32 to vector<1x128xf32>
    %266 = arith.mulf %265, %258 : vector<1x128xf32>
    %267 = arith.addf %243, %266 : vector<1x128xf32>
    %268 = vector.broadcast %7 : f32 to vector<1x128xf32>
    %269 = arith.mulf %268, %87 : vector<1x128xf32>
    %270 = vector.broadcast %47 : f32 to vector<1x128xf32>
    %271 = arith.addf %270, %269 : vector<1x128xf32>
    %272 = vector.broadcast %17 : f32 to vector<1x128xf32>
    %273 = arith.mulf %272, %90 : vector<1x128xf32>
    %274 = arith.addf %271, %273 : vector<1x128xf32>
    %275 = vector.broadcast %27 : f32 to vector<1x128xf32>
    %276 = arith.mulf %275, %93 : vector<1x128xf32>
    %277 = arith.addf %274, %276 : vector<1x128xf32>
    %278 = vector.broadcast %37 : f32 to vector<1x128xf32>
    %279 = arith.mulf %278, %96 : vector<1x128xf32>
    %280 = arith.addf %277, %279 : vector<1x128xf32>
    %cst_169 = arith.constant 0.000000e+00 : f32
    %281 = vector.broadcast %cst_169 : f32 to vector<1x128xf32>
    %282 = arith.maximumf %280, %281 : vector<1x128xf32>
    %283 = vector.broadcast %71 : f32 to vector<1x128xf32>
    %284 = arith.mulf %283, %282 : vector<1x128xf32>
    %285 = arith.addf %261, %284 : vector<1x128xf32>
    %286 = vector.broadcast %72 : f32 to vector<1x128xf32>
    %287 = arith.mulf %286, %282 : vector<1x128xf32>
    %288 = arith.addf %264, %287 : vector<1x128xf32>
    %289 = vector.broadcast %73 : f32 to vector<1x128xf32>
    %290 = arith.mulf %289, %282 : vector<1x128xf32>
    %291 = arith.addf %267, %290 : vector<1x128xf32>
    %292 = vector.broadcast %8 : f32 to vector<1x128xf32>
    %293 = arith.mulf %292, %87 : vector<1x128xf32>
    %294 = vector.broadcast %48 : f32 to vector<1x128xf32>
    %295 = arith.addf %294, %293 : vector<1x128xf32>
    %296 = vector.broadcast %18 : f32 to vector<1x128xf32>
    %297 = arith.mulf %296, %90 : vector<1x128xf32>
    %298 = arith.addf %295, %297 : vector<1x128xf32>
    %299 = vector.broadcast %28 : f32 to vector<1x128xf32>
    %300 = arith.mulf %299, %93 : vector<1x128xf32>
    %301 = arith.addf %298, %300 : vector<1x128xf32>
    %302 = vector.broadcast %38 : f32 to vector<1x128xf32>
    %303 = arith.mulf %302, %96 : vector<1x128xf32>
    %304 = arith.addf %301, %303 : vector<1x128xf32>
    %cst_170 = arith.constant 0.000000e+00 : f32
    %305 = vector.broadcast %cst_170 : f32 to vector<1x128xf32>
    %306 = arith.maximumf %304, %305 : vector<1x128xf32>
    %307 = vector.broadcast %74 : f32 to vector<1x128xf32>
    %308 = arith.mulf %307, %306 : vector<1x128xf32>
    %309 = arith.addf %285, %308 : vector<1x128xf32>
    %310 = vector.broadcast %75 : f32 to vector<1x128xf32>
    %311 = arith.mulf %310, %306 : vector<1x128xf32>
    %312 = arith.addf %288, %311 : vector<1x128xf32>
    %313 = vector.broadcast %76 : f32 to vector<1x128xf32>
    %314 = arith.mulf %313, %306 : vector<1x128xf32>
    %315 = arith.addf %291, %314 : vector<1x128xf32>
    %316 = vector.broadcast %9 : f32 to vector<1x128xf32>
    %317 = arith.mulf %316, %87 : vector<1x128xf32>
    %318 = vector.broadcast %49 : f32 to vector<1x128xf32>
    %319 = arith.addf %318, %317 : vector<1x128xf32>
    %320 = vector.broadcast %19 : f32 to vector<1x128xf32>
    %321 = arith.mulf %320, %90 : vector<1x128xf32>
    %322 = arith.addf %319, %321 : vector<1x128xf32>
    %323 = vector.broadcast %29 : f32 to vector<1x128xf32>
    %324 = arith.mulf %323, %93 : vector<1x128xf32>
    %325 = arith.addf %322, %324 : vector<1x128xf32>
    %326 = vector.broadcast %39 : f32 to vector<1x128xf32>
    %327 = arith.mulf %326, %96 : vector<1x128xf32>
    %328 = arith.addf %325, %327 : vector<1x128xf32>
    %cst_171 = arith.constant 0.000000e+00 : f32
    %329 = vector.broadcast %cst_171 : f32 to vector<1x128xf32>
    %330 = arith.maximumf %328, %329 : vector<1x128xf32>
    %331 = vector.broadcast %77 : f32 to vector<1x128xf32>
    %332 = arith.mulf %331, %330 : vector<1x128xf32>
    %333 = arith.addf %309, %332 : vector<1x128xf32>
    %334 = vector.broadcast %78 : f32 to vector<1x128xf32>
    %335 = arith.mulf %334, %330 : vector<1x128xf32>
    %336 = arith.addf %312, %335 : vector<1x128xf32>
    %337 = vector.broadcast %79 : f32 to vector<1x128xf32>
    %338 = arith.mulf %337, %330 : vector<1x128xf32>
    %339 = arith.addf %315, %338 : vector<1x128xf32>
    %c0_172 = arith.constant 0 : index
    %340 = arith.index_cast %84 : i32 to index
    %c0_173 = arith.constant 0 : index
    %341 = vector.load %arg4[%c0_172, %340, %c0_173] : memref<3x1x128xf32, #tpu.memory_space<vmem>>, vector<1x1x128xf32>
    %342 = vector.shape_cast %341 : vector<1x1x128xf32> to vector<1x128xf32>
    %343 = vector.shape_cast %333 : vector<1x128xf32> to vector<1x1x128xf32>
    tpu.vector_store %arg4[%c0_172, %340, %c0_173], %343 {strides = array<i32>} : memref<3x1x128xf32, #tpu.memory_space<vmem>>, vector<1x1x128xf32>,
    %c1_174 = arith.constant 1 : index
    %344 = arith.index_cast %84 : i32 to index
    %c0_175 = arith.constant 0 : index
    %345 = vector.load %arg4[%c1_174, %344, %c0_175] : memref<3x1x128xf32, #tpu.memory_space<vmem>>, vector<1x1x128xf32>
    %346 = vector.shape_cast %345 : vector<1x1x128xf32> to vector<1x128xf32>
    %347 = vector.shape_cast %336 : vector<1x128xf32> to vector<1x1x128xf32>
    tpu.vector_store %arg4[%c1_174, %344, %c0_175], %347 {strides = array<i32>} : memref<3x1x128xf32, #tpu.memory_space<vmem>>, vector<1x1x128xf32>,
    %c2_176 = arith.constant 2 : index
    %348 = arith.index_cast %84 : i32 to index
    %c0_177 = arith.constant 0 : index
    %349 = vector.load %arg4[%c2_176, %348, %c0_177] : memref<3x1x128xf32, #tpu.memory_space<vmem>>, vector<1x1x128xf32>
    %350 = vector.shape_cast %349 : vector<1x1x128xf32> to vector<1x128xf32>
    %351 = vector.shape_cast %339 : vector<1x128xf32> to vector<1x1x128xf32>
    tpu.vector_store %arg4[%c2_176, %348, %c0_177], %351 {strides = array<i32>} : memref<3x1x128xf32, #tpu.memory_space<vmem>>, vector<1x1x128xf32>,
    %c1_i32_178 = arith.constant 1 : i32
    return
  }
  func.func @transform_0(%arg0: i32) -> (i32, i32, i32) {
    %c0_i32 = arith.constant 0 : i32
    %c0_i32_0 = arith.constant 0 : i32
    %c0_i32_1 = arith.constant 0 : i32
    return %c0_i32, %arg0, %c0_i32_0 : i32, i32, i32
  }
  func.func @transform_1(%arg0: i32) -> (i32, i32) {
    %c0_i32 = arith.constant 0 : i32
    %c0_i32_0 = arith.constant 0 : i32
    %c0_i32_1 = arith.constant 0 : i32
    return %c0_i32, %c0_i32_0 : i32, i32
  }
  func.func @transform_2(%arg0: i32) -> (i32, i32) {
    %c0_i32 = arith.constant 0 : i32
    %c0_i32_0 = arith.constant 0 : i32
    %c0_i32_1 = arith.constant 0 : i32
    return %c0_i32, %c0_i32_0 : i32, i32
  }
  func.func @transform_3(%arg0: i32) -> (i32, i32, i32) {
    %c0_i32 = arith.constant 0 : i32
    %c0_i32_0 = arith.constant 0 : i32
    %c0_i32_1 = arith.constant 0 : i32
    return %c0_i32, %arg0, %c0_i32_0 : i32, i32, i32
  }
}

</mosaic_0001>

<llo_original>
// kernel: tpu_custom_call.1
$region0: #{tpu_custom_call.1}
  #allocation0 [shape = 'u32[]', space=smem, size = 0x4, offset = 0x4, fixed_abs, tag = 'smem constant byte address 0x4 - core index']
  #allocation1 [shape = 'u32[144,128]{1,0:T(1,128)}', space=vmem, size = 0x12000, scoped, tag = 'internal scratch']
  %s0 = inlined_call_operand.vmem [shape: f32[4,1,128], index: 0, kind: input, shape index: {}]
  %s1 = inlined_call_operand.vmem [shape: f32[5,10], index: 1, kind: input, shape index: {}]
  %s2 = inlined_call_operand.vmem [shape: f32[11,3], index: 2, kind: input, shape index: {}]
  %s3 = inlined_call_operand.hbm [shape: f32[3,1,128], index: 3, kind: output, shape index: {}]
  %s4 = sld [smem:[#allocation0]]
  $region30: #{tpu_custom_call.1} parent=0
    _
  %s6 = ssub.s32 1, %s4
  %s7 = scalar_select 0, %s6, %s4
  $region1: #{tpu_custom_call.1} parent=0
    #allocation2 [shape = 'u8[4096]{0}', space=smem, size = 0x1000, scoped, tag = 'input window, operand 1, single buffered']
    #allocation3 [shape = 's32[1]{0}', space=sflag, size = 0x4, scoped, tag = 'scoped memory for tpu_custom_call.1']
    #allocation4 [shape = 's32[1]{0}', space=sflag, size = 0x4, scoped, tag = 'scoped memory for tpu_custom_call.1']
    #allocation5 [shape = 'u8[8192]{0}', space=smem, size = 0x2000, scoped, tag = 'input window, operand 2, single buffered']
    #allocation6 [shape = 's32[1]{0}', space=sflag, size = 0x4, scoped, tag = 'scoped memory for tpu_custom_call.1']
    #allocation7 [shape = 'u8[1536]{0}', space=vmem, size = 0x800, scoped, tag = 'output window, operand 0, single buffered']
    %8 = vsyncpa [#allocation4], 0
    %9 = vsyncpa [#allocation6], 0
    %10 = vsyncpa [#allocation3], 0
    // Predicated region
    $region2: #{tpu_custom_call.1} parent=1 // pred_check
      _
    $region3: #{tpu_custom_call.1} parent=1 // pred_check_branch
      %12 = sbr.rel (0) target = $region5
    $region4: #{tpu_custom_call.1} parent=1 // pred_region
      _
    $region5: #{tpu_custom_call.1} parent=1 // pred_fallthru
      _
    // Predicated region
    $region6: #{tpu_custom_call.1} parent=1 // pred_check
      _
    $region7: #{tpu_custom_call.1} parent=1 // pred_check_branch
      %14 = sbr.rel (0) target = $region9
    $region8: #{tpu_custom_call.1} parent=1 // pred_region
      %s16 = ssub.s32 128, 128
      %17 = vsyncadd [#allocation4], %s16
      %s19 = sshll.u32 %s1, 4
      %s20 = int_to_ptr.vmem [resolvable:$true] %s19
      %22 = dma.vmem_to_smem %s20, 128, [#allocation2], [#allocation4]
    $region9: #{tpu_custom_call.1} parent=1 // pred_fallthru
      _
    // Predicated region
    $region10: #{tpu_custom_call.1} parent=1 // pred_check
      _
    $region11: #{tpu_custom_call.1} parent=1 // pred_check_branch
      %24 = sbr.rel (0) target = $region13
    $region12: #{tpu_custom_call.1} parent=1 // pred_region
      %s26 = ssub.s32 256, 256
      %27 = vsyncadd [#allocation6], %s26
      %s28 = sshll.u32 %s2, 4
      %s29 = int_to_ptr.vmem [resolvable:$true] %s28
      %34 = dma.vmem_to_smem %s29, 256, [#allocation5], [#allocation6], 128, 128, 8
    $region13: #{tpu_custom_call.1} parent=1 // pred_fallthru
      _
    // Predicated region
    $region14: #{tpu_custom_call.1} parent=1 // pred_check
      _
    $region15: #{tpu_custom_call.1} parent=1 // pred_check_branch
      %36 = sbr.rel (0) target = $region17
    $region16: #{tpu_custom_call.1} parent=1 // pred_region
      %37 = dma.done [#allocation4], 128
    $region17: #{tpu_custom_call.1} parent=1 // pred_fallthru
      _
    // Predicated region
    $region18: #{tpu_custom_call.1} parent=1 // pred_check
      _
    $region19: #{tpu_custom_call.1} parent=1 // pred_check_branch
      %39 = sbr.rel (0) target = $region21
    $region20: #{tpu_custom_call.1} parent=1 // pred_region
      %40 = dma.done [#allocation6], 256
    $region21: #{tpu_custom_call.1} parent=1 // pred_fallthru
      _
    %41 = sfence
    %s42 = sld [smem:[#allocation2]]
    %s43 = sld [smem:[#allocation2 + $0x1]]
    %s44 = sld [smem:[#allocation2 + $0x2]]
    %s45 = sld [smem:[#allocation2 + $0x3]]
    %s46 = sld [smem:[#allocation2 + $0x4]]
    %s47 = sld [smem:[#allocation2 + $0x5]]
    %s48 = sld [smem:[#allocation2 + $0x6]]
    %s49 = sld [smem:[#allocation2 + $0x7]]
    %s50 = sld [smem:[#allocation2 + $0x8]]
    %s51 = sld [smem:[#allocation2 + $0x9]]
    %s52 = sld [smem:[#allocation2 + $0x80]]
    %s53 = sld [smem:[#allocation2 + $0x81]]
    %s54 = sld [smem:[#allocation2 + $0x82]]
    %s55 = sld [smem:[#allocation2 + $0x83]]
    %s56 = sld [smem:[#allocation2 + $0x84]]
    %s57 = sld [smem:[#allocation2 + $0x85]]
    %s58 = sld [smem:[#allocation2 + $0x86]]
    %s59 = sld [smem:[#allocation2 + $0x87]]
    %s60 = sld [smem:[#allocation2 + $0x88]]
    %s61 = sld [smem:[#allocation2 + $0x89]]
    %s62 = sld [smem:[#allocation2 + $0x100]]
    %s63 = sld [smem:[#allocation2 + $0x101]]
    %s64 = sld [smem:[#allocation2 + $0x102]]
    %s65 = sld [smem:[#allocation2 + $0x103]]
    %s66 = sld [smem:[#allocation2 + $0x104]]
    %s67 = sld [smem:[#allocation2 + $0x105]]
    %s68 = sld [smem:[#allocation2 + $0x106]]
    %s69 = sld [smem:[#allocation2 + $0x107]]
    %s70 = sld [smem:[#allocation2 + $0x108]]
    %s71 = sld [smem:[#allocation2 + $0x109]]
    %s72 = sld [smem:[#allocation2 + $0x180]]
    %s73 = sld [smem:[#allocation2 + $0x181]]
    %s74 = sld [smem:[#allocation2 + $0x182]]
    %s75 = sld [smem:[#allocation2 + $0x183]]
    %s76 = sld [smem:[#allocation2 + $0x184]]
    %s77 = sld [smem:[#allocation2 + $0x185]]
    %s78 = sld [smem:[#allocation2 + $0x186]]
    %s79 = sld [smem:[#allocation2 + $0x187]]
    %s80 = sld [smem:[#allocation2 + $0x188]]
    %s81 = sld [smem:[#allocation2 + $0x189]]
    %s82 = sld [smem:[#allocation2 + $0x200]]
    %s83 = sld [smem:[#allocation2 + $0x201]]
    %s84 = sld [smem:[#allocation2 + $0x202]]
    %s85 = sld [smem:[#allocation2 + $0x203]]
    %s86 = sld [smem:[#allocation2 + $0x204]]
    %s87 = sld [smem:[#allocation2 + $0x205]]
    %s88 = sld [smem:[#allocation2 + $0x206]]
    %s89 = sld [smem:[#allocation2 + $0x207]]
    %s90 = sld [smem:[#allocation2 + $0x208]]
    %s91 = sld [smem:[#allocation2 + $0x209]]
    %s92 = sld [smem:[#allocation5]]
    %s93 = sld [smem:[#allocation5 + $0x1]]
    %s94 = sld [smem:[#allocation5 + $0x2]]
    %s95 = sld [smem:[#allocation5 + $0x80]]
    %s96 = sld [smem:[#allocation5 + $0x81]]
    %s97 = sld [smem:[#allocation5 + $0x82]]
    %s98 = sld [smem:[#allocation5 + $0x100]]
    %s99 = sld [smem:[#allocation5 + $0x101]]
    %s100 = sld [smem:[#allocation5 + $0x102]]
    %s101 = sld [smem:[#allocation5 + $0x180]]
    %s102 = sld [smem:[#allocation5 + $0x181]]
    %s103 = sld [smem:[#allocation5 + $0x182]]
    %s104 = sld [smem:[#allocation5 + $0x200]]
    %s105 = sld [smem:[#allocation5 + $0x201]]
    %s106 = sld [smem:[#allocation5 + $0x202]]
    %s107 = sld [smem:[#allocation5 + $0x280]]
    %s108 = sld [smem:[#allocation5 + $0x281]]
    %s109 = sld [smem:[#allocation5 + $0x282]]
    %s110 = sld [smem:[#allocation5 + $0x300]]
    %s111 = sld [smem:[#allocation5 + $0x301]]
    %s112 = sld [smem:[#allocation5 + $0x302]]
    %s113 = sld [smem:[#allocation5 + $0x380]]
    %s114 = sld [smem:[#allocation5 + $0x381]]
    %s115 = sld [smem:[#allocation5 + $0x382]]
    %s116 = sld [smem:[#allocation5 + $0x400]]
    %s117 = sld [smem:[#allocation5 + $0x401]]
    %s118 = sld [smem:[#allocation5 + $0x402]]
    %s119 = sld [smem:[#allocation5 + $0x480]]
    %s120 = sld [smem:[#allocation5 + $0x481]]
    %s121 = sld [smem:[#allocation5 + $0x482]]
    %s122 = sld [smem:[#allocation5 + $0x500]]
    %s123 = sld [smem:[#allocation5 + $0x501]]
    %s124 = sld [smem:[#allocation5 + $0x502]]
    %v125 = vld [vmem:[%s0] sm:$0x1]
    %s126 = sadd.s32 0, 1
    %s127 = scalar_lea.vmem %s0, %s126
    %v128 = vld [vmem:[%s127] sm:$0x1]
    %s129 = sadd.s32 0, 2
    %s130 = scalar_lea.vmem %s0, %s129
    %v131 = vld [vmem:[%s130] sm:$0x1]
    %s132 = sadd.s32 0, 3
    %s133 = scalar_lea.vmem %s0, %s132
    %v134 = vld [vmem:[%s133] sm:$0x1]
    %v135 = vstv %s122
    %v136 = vstv %s123
    %v137 = vstv %s124
    %v138 = vstv %s42
    %v139 = vmul.f32 %v138, %v125
    %v140 = vstv %s82
    %v141 = vadd.f32 %v140, %v139
    %v142 = vstv %s52
    %v143 = vmul.f32 %v142, %v128
    %v144 = vadd.f32 %v141, %v143
    %v145 = vstv %s62
    %v146 = vmul.f32 %v145, %v131
    %v147 = vadd.f32 %v144, %v146
    %v148 = vstv %s72
    %v149 = vmul.f32 %v148, %v134
    %v150 = vadd.f32 %v147, %v149
    %v151 = vmax.f32 %v150, 0.0
    %v152 = vstv %s92
    %v153 = vmul.f32 %v152, %v151
    %v154 = vadd.f32 %v135, %v153
    %v155 = vstv %s93
    %v156 = vmul.f32 %v155, %v151
    %v157 = vadd.f32 %v136, %v156
    %v158 = vstv %s94
    %v159 = vmul.f32 %v158, %v151
    %v160 = vadd.f32 %v137, %v159
    %v161 = vstv %s43
    %v162 = vmul.f32 %v161, %v125
    %v163 = vstv %s83
    %v164 = vadd.f32 %v163, %v162
    %v165 = vstv %s53
    %v166 = vmul.f32 %v165, %v128
    %v167 = vadd.f32 %v164, %v166
    %v168 = vstv %s63
    %v169 = vmul.f32 %v168, %v131
    %v170 = vadd.f32 %v167, %v169
    %v171 = vstv %s73
    %v172 = vmul.f32 %v171, %v134
    %v173 = vadd.f32 %v170, %v172
    %v174 = vmax.f32 %v173, 0.0
    %v175 = vstv %s95
    %v176 = vmul.f32 %v175, %v174
    %v177 = vadd.f32 %v154, %v176
    %v178 = vstv %s96
    %v179 = vmul.f32 %v178, %v174
    %v180 = vadd.f32 %v157, %v179
    %v181 = vstv %s97
    %v182 = vmul.f32 %v181, %v174
    %v183 = vadd.f32 %v160, %v182
    %v184 = vstv %s44
    %v185 = vmul.f32 %v184, %v125
    %v186 = vstv %s84
    %v187 = vadd.f32 %v186, %v185
    %v188 = vstv %s54
    %v189 = vmul.f32 %v188, %v128
    %v190 = vadd.f32 %v187, %v189
    %v191 = vstv %s64
    %v192 = vmul.f32 %v191, %v131
    %v193 = vadd.f32 %v190, %v192
    %v194 = vstv %s74
    %v195 = vmul.f32 %v194, %v134
    %v196 = vadd.f32 %v193, %v195
    %v197 = vmax.f32 %v196, 0.0
    %v198 = vstv %s98
    %v199 = vmul.f32 %v198, %v197
    %v200 = vadd.f32 %v177, %v199
    %v201 = vstv %s99
    %v202 = vmul.f32 %v201, %v197
    %v203 = vadd.f32 %v180, %v202
    %v204 = vstv %s100
    %v205 = vmul.f32 %v204, %v197
    %v206 = vadd.f32 %v183, %v205
    %v207 = vstv %s45
    %v208 = vmul.f32 %v207, %v125
    %v209 = vstv %s85
    %v210 = vadd.f32 %v209, %v208
    %v211 = vstv %s55
    %v212 = vmul.f32 %v211, %v128
    %v213 = vadd.f32 %v210, %v212
    %v214 = vstv %s65
    %v215 = vmul.f32 %v214, %v131
    %v216 = vadd.f32 %v213, %v215
    %v217 = vstv %s75
    %v218 = vmul.f32 %v217, %v134
    %v219 = vadd.f32 %v216, %v218
    %v220 = vmax.f32 %v219, 0.0
    %v221 = vstv %s101
    %v222 = vmul.f32 %v221, %v220
    %v223 = vadd.f32 %v200, %v222
    %v224 = vstv %s102
    %v225 = vmul.f32 %v224, %v220
    %v226 = vadd.f32 %v203, %v225
    %v227 = vstv %s103
    %v228 = vmul.f32 %v227, %v220
    %v229 = vadd.f32 %v206, %v228
    %v230 = vstv %s46
    %v231 = vmul.f32 %v230, %v125
    %v232 = vstv %s86
    %v233 = vadd.f32 %v232, %v231
    %v234 = vstv %s56
    %v235 = vmul.f32 %v234, %v128
    %v236 = vadd.f32 %v233, %v235
    %v237 = vstv %s66
    %v238 = vmul.f32 %v237, %v131
    %v239 = vadd.f32 %v236, %v238
    %v240 = vstv %s76
    %v241 = vmul.f32 %v240, %v134
    %v242 = vadd.f32 %v239, %v241
    %v243 = vmax.f32 %v242, 0.0
    %v244 = vstv %s104
    %v245 = vmul.f32 %v244, %v243
    %v246 = vadd.f32 %v223, %v245
    %v247 = vstv %s105
    %v248 = vmul.f32 %v247, %v243
    %v249 = vadd.f32 %v226, %v248
    %v250 = vstv %s106
    %v251 = vmul.f32 %v250, %v243
    %v252 = vadd.f32 %v229, %v251
    %v253 = vstv %s47
    %v254 = vmul.f32 %v253, %v125
    %v255 = vstv %s87
    %v256 = vadd.f32 %v255, %v254
    %v257 = vstv %s57
    %v258 = vmul.f32 %v257, %v128
    %v259 = vadd.f32 %v256, %v258
    %v260 = vstv %s67
    %v261 = vmul.f32 %v260, %v131
    %v262 = vadd.f32 %v259, %v261
    %v263 = vstv %s77
    %v264 = vmul.f32 %v263, %v134
    %v265 = vadd.f32 %v262, %v264
    %v266 = vmax.f32 %v265, 0.0
    %v267 = vstv %s107
    %v268 = vmul.f32 %v267, %v266
    %v269 = vadd.f32 %v246, %v268
    %v270 = vstv %s108
    %v271 = vmul.f32 %v270, %v266
    %v272 = vadd.f32 %v249, %v271
    %v273 = vstv %s109
    %v274 = vmul.f32 %v273, %v266
    %v275 = vadd.f32 %v252, %v274
    %v276 = vstv %s48
    %v277 = vmul.f32 %v276, %v125
    %v278 = vstv %s88
    %v279 = vadd.f32 %v278, %v277
    %v280 = vstv %s58
    %v281 = vmul.f32 %v280, %v128
    %v282 = vadd.f32 %v279, %v281
    %v283 = vstv %s68
    %v284 = vmul.f32 %v283, %v131
    %v285 = vadd.f32 %v282, %v284
    %v286 = vstv %s78
    %v287 = vmul.f32 %v286, %v134
    %v288 = vadd.f32 %v285, %v287
    %v289 = vmax.f32 %v288, 0.0
    %v290 = vstv %s110
    %v291 = vmul.f32 %v290, %v289
    %v292 = vadd.f32 %v269, %v291
    %v293 = vstv %s111
    %v294 = vmul.f32 %v293, %v289
    %v295 = vadd.f32 %v272, %v294
    %v296 = vstv %s112
    %v297 = vmul.f32 %v296, %v289
    %v298 = vadd.f32 %v275, %v297
    %v299 = vstv %s49
    %v300 = vmul.f32 %v299, %v125
    %v301 = vstv %s89
    %v302 = vadd.f32 %v301, %v300
    %v303 = vstv %s59
    %v304 = vmul.f32 %v303, %v128
    %v305 = vadd.f32 %v302, %v304
    %v306 = vstv %s69
    %v307 = vmul.f32 %v306, %v131
    %v308 = vadd.f32 %v305, %v307
    %v309 = vstv %s79
    %v310 = vmul.f32 %v309, %v134
    %v311 = vadd.f32 %v308, %v310
    %v312 = vmax.f32 %v311, 0.0
    %v313 = vstv %s113
    %v314 = vmul.f32 %v313, %v312
    %v315 = vadd.f32 %v292, %v314
    %v316 = vstv %s114
    %v317 = vmul.f32 %v316, %v312
    %v318 = vadd.f32 %v295, %v317
    %v319 = vstv %s115
    %v320 = vmul.f32 %v319, %v312
    %v321 = vadd.f32 %v298, %v320
    %v322 = vstv %s50
    %v323 = vmul.f32 %v322, %v125
    %v324 = vstv %s90
    %v325 = vadd.f32 %v324, %v323
    %v326 = vstv %s60
    %v327 = vmul.f32 %v326, %v128
    %v328 = vadd.f32 %v325, %v327
    %v329 = vstv %s70
    %v330 = vmul.f32 %v329, %v131
    %v331 = vadd.f32 %v328, %v330
    %v332 = vstv %s80
    %v333 = vmul.f32 %v332, %v134
    %v334 = vadd.f32 %v331, %v333
    %v335 = vmax.f32 %v334, 0.0
    %v336 = vstv %s116
    %v337 = vmul.f32 %v336, %v335
    %v338 = vadd.f32 %v315, %v337
    %v339 = vstv %s117
    %v340 = vmul.f32 %v339, %v335
    %v341 = vadd.f32 %v318, %v340
    %v342 = vstv %s118
    %v343 = vmul.f32 %v342, %v335
    %v344 = vadd.f32 %v321, %v343
    %v345 = vstv %s51
    %v346 = vmul.f32 %v345, %v125
    %v347 = vstv %s91
    %v348 = vadd.f32 %v347, %v346
    %v349 = vstv %s61
    %v350 = vmul.f32 %v349, %v128
    %v351 = vadd.f32 %v348, %v350
    %v352 = vstv %s71
    %v353 = vmul.f32 %v352, %v131
    %v354 = vadd.f32 %v351, %v353
    %v355 = vstv %s81
    %v356 = vmul.f32 %v355, %v134
    %v357 = vadd.f32 %v354, %v356
    %v358 = vmax.f32 %v357, 0.0
    %v359 = vstv %s119
    %v360 = vmul.f32 %v359, %v358
    %v361 = vadd.f32 %v338, %v360
    %v362 = vstv %s120
    %v363 = vmul.f32 %v362, %v358
    %v364 = vadd.f32 %v341, %v363
    %v365 = vstv %s121
    %v366 = vmul.f32 %v365, %v358
    %v367 = vadd.f32 %v344, %v366
    %368 = vst [vmem:[#allocation7] sm:$0x1] %v361
    %s369 = scalar_lea.vmem [#allocation7], %s126
    %370 = vst [vmem:[%s369] sm:$0x1] %v364
    %s371 = scalar_lea.vmem [#allocation7], %s129
    %372 = vst [vmem:[%s371] sm:$0x1] %v367
    // Predicated region
    $region22: #{tpu_custom_call.1} parent=1 // pred_check
      _
    $region23: #{tpu_custom_call.1} parent=1 // pred_check_branch
      %374 = sbr.rel (0) target = $region25
    $region24: #{tpu_custom_call.1} parent=1 // pred_region
      %s376 = ssub.s32 48, 48
      %377 = vsyncadd [#allocation3], %s376
      %s378 = sshll.u32 [#allocation7], 4
      %s379 = int_to_ptr.vmem [resolvable:$true] %s378
      %384 = dma.vmem_to_hbm [thread:$0]  %s379, 48, %s3, [#allocation3], 16, 16, 1
    $region25: #{tpu_custom_call.1} parent=1 // pred_fallthru
      _
    // Predicated region
    $region26: #{tpu_custom_call.1} parent=1 // pred_check
      _
    $region27: #{tpu_custom_call.1} parent=1 // pred_check_branch
      %386 = sbr.rel (0) target = $region29
    $region28: #{tpu_custom_call.1} parent=1 // pred_region
      %387 = dma.done [#allocation3], 48
    $region29: #{tpu_custom_call.1} parent=1 // pred_fallthru
      _
    %388 = vsyncpa [#allocation3], 1
    %389 = vsyncpa [#allocation4], 1
    %390 = vsyncpa [#allocation6], 1

</llo_original>
